<compile_context>
chip_gen: v7x
topology: tpu7x:2x2x1
jax: 0.10.0
libtpu: 0.0.40
codegen_flags: <defaults>
</compile_context>

<pallas_src>
import functools

import numpy as np

import jax
import jax.numpy as jnp
from jax import lax
from jax.experimental import pallas as pl
from jax.experimental.pallas import tpu as pltpu


_MASK = -2e30    # excluded logits (self-similarity, padded columns)
_M_INIT = -1e30  # running-max init; > _MASK so exp(_MASK - m) == 0 exactly (no NaN)


# ----------------------------------------------------------------------------
# Fused kernel: row tile of S (MXU, bf16 in / f32 acc) + online masked logsumexp
# over column chunks + partner-row positive + per-row CE.
# ----------------------------------------------------------------------------
def _ntxent_kernel(z_ref, o_ref, *, b_real, b_pad, inv_temp,
                   row_block, col_block, num_col_blocks, has_pad):
    t = pl.program_id(0)
    tm = row_block

    # ---- row tile + partner tile, sliced from the resident z (bf16) ----
    row0 = t * row_block
    z_rows = z_ref[pl.ds(pl.multiple_of(row0, row_block), tm), :]       # (TM, Dp)
    part0 = jnp.where(row0 < b_pad, row0 + b_pad, row0 - b_pad)
    z_part = z_ref[pl.ds(pl.multiple_of(part0, row_block), tm), :]      # (TM, Dp)

    # Fold 1/T into the (TM, D) MXU operand instead of the (TM, N) logits.
    z_rows_s = (z_rows * inv_temp).astype(jnp.bfloat16)

    # Positive logit via a partner-row dot: O(TM*D), f32 accumulation.
    pos = jnp.sum(z_rows.astype(jnp.float32) * z_part.astype(jnp.float32),
                  axis=1, keepdims=True) * inv_temp                     # (TM, 1)

    row_ids = row0 + lax.broadcasted_iota(jnp.int32, (tm, 1), 0)        # (TM, 1)

    # ---- online (flash-style) logsumexp over column chunks ----
    def col_step(col0, carry):
        m_prev, l_prev = carry
        start = col0 if isinstance(col0, int) else pl.multiple_of(col0, col_block)
        z_cols = z_ref[pl.ds(start, col_block), :]                      # (CB, Dp) bf16
        s = lax.dot_general(z_rows_s, z_cols,
                            dimension_numbers=(((1,), (1,)), ((), ())),
                            preferred_element_type=jnp.float32)         # (TM, CB) f32
        col_ids = col0 + lax.broadcasted_iota(jnp.int32, (1, col_block), 1)
        drop = row_ids == col_ids                                       # exclude self
        if has_pad:                                                     # static branch
            col_valid = jnp.logical_or(
                col_ids < b_real,
                jnp.logical_and(col_ids >= b_pad, col_ids < b_pad + b_real))
            drop = jnp.logical_or(drop, jnp.logical_not(col_valid))
        s = jnp.where(drop, _MASK, s)
        m_new = jnp.maximum(m_prev, jnp.max(s, axis=1, keepdims=True))
        l_new = (l_prev * jnp.exp(m_prev - m_new)
                 + jnp.sum(jnp.exp(s - m_new), axis=1, keepdims=True))
        return m_new, l_new

    m0 = jnp.full((tm, 1), _M_INIT, jnp.float32)
    l0 = jnp.zeros((tm, 1), jnp.float32)
    if num_col_blocks == 1:
        m_f, l_f = col_step(0, (m0, l0))
    else:
        m_f, l_f = lax.fori_loop(
            0, num_col_blocks,
            lambda c, carry: col_step(c * col_block, carry),
            (m0, l0))

    lse = m_f + jnp.log(l_f)                                            # (TM, 1)
    per_row = lse - pos                                                 # CE(target=0)
    if has_pad:                                                         # static branch
        row_valid = jnp.logical_or(
            row_ids < b_real,
            jnp.logical_and(row_ids >= b_pad, row_ids < b_pad + b_real))
        per_row = jnp.where(row_valid, per_row, 0.0)
    o_ref[...] = per_row


# ----------------------------------------------------------------------------
# Wrapper
# ----------------------------------------------------------------------------
def nt_xent_loss(zis, zjs, *, temperature, use_cosine_similarity=False,
                 row_block=None, col_block=None):
    """NT-Xent loss of two views zis, zjs of shape (batch_size, dim)."""
    assert zis.ndim == 2 and zis.shape == zjs.shape
    b, d = zis.shape
    n = 2 * b

    z = jnp.concatenate([zis, zjs], axis=0).astype(jnp.float32)          # (N, D)
    if use_cosine_similarity:
        # Intended cosine path == dot product of L2-normalized rows.
        # (The PyTorch static method is broken — it constructs nn.CosineSimilarity
        #  with tensors — so this is the intended functional semantics.)
        z = z * lax.rsqrt(jnp.sum(z * z, axis=1, keepdims=True) + 1e-12)

    # ---- static padding / tiling plan ----
    # Pad each half to b_pad (multiple of 64) so N_pad = 2*b_pad is a multiple of
    # 128 (lane-dense S tiles) and every row tile's partner rows form one
    # contiguous, tile-aligned slice of the resident z.
    b_pad = -(-b // 64) * 64
    if row_block is None:
        row_block = next(rb for rb in (256, 128, 64) if b_pad % rb == 0)
    assert row_block % 8 == 0 and b_pad % row_block == 0
    n_pad = 2 * b_pad
    num_row_tiles = n_pad // row_block

    if col_block is None:
        col_block = next(cb for cb in (2048, 1024, 512, 256, 128) if n_pad % cb == 0)
    assert col_block % 128 == 0 and n_pad % col_block == 0
    num_col_blocks = n_pad // col_block

    d_pad = -(-d // 128) * 128        # lane-aligned contraction dim for the MXU

    # bf16 MXU operands (f32 accumulation in-kernel): halves HBM read & resident VMEM.
    z_bf = z.astype(jnp.bfloat16)
    zis_b = jnp.pad(z_bf[:b], ((0, b_pad - b), (0, d_pad - d)))
    zjs_b = jnp.pad(z_bf[b:], ((0, b_pad - b), (0, d_pad - d)))
    z_p = jnp.concatenate([zis_b, zjs_b], axis=0)                        # (N_pad, D_pad)

    # VMEM budget: resident z (single-buffered) + row/partner/col slices + S temps.
    est = (n_pad * d_pad * 2
           + (2 * row_block + 2 * col_block) * d_pad * 2
           + 2 * row_block * d_pad * 4
           + 6 * row_block * col_block * 4)
    vmem_limit = max(32 << 20, min(int(1.5 * est) + (2 << 20), 100 << 20))

    cost = pl.CostEstimate(
        flops=2 * n_pad * n_pad * d_pad + 2 * n_pad * d_pad,
        transcendentals=n_pad * n_pad,
        bytes_accessed=n_pad * d_pad * 2 + n_pad * 4)

    per_row = pl.pallas_call(
        functools.partial(
            _ntxent_kernel, b_real=b, b_pad=b_pad,
            inv_temp=float(1.0 / temperature),
            row_block=row_block, col_block=col_block,
            num_col_blocks=num_col_blocks, has_pad=(b_pad != b)),
        out_shape=jax.ShapeDtypeStruct((n_pad, 1), jnp.float32),
        grid=(num_row_tiles,),
        in_specs=[pl.BlockSpec((n_pad, d_pad), lambda t: (0, 0),
                               pipeline_mode=pl.Buffered(1))],  # resident, single-buffered
        out_specs=pl.BlockSpec((row_block, 1), lambda t: (t, 0)),
        compiler_params=pltpu.CompilerParams(
            dimension_semantics=("parallel",),   # independent row tiles -> megacore on v7x
            vmem_limit_bytes=vmem_limit),
        cost_estimate=cost,
    )(z_p)

    return jnp.sum(per_row) / n


# ----------------------------------------------------------------------------
# Pure numpy reference (literal transcription of the PyTorch forward; labels are
# the intended class-index zeros; reduction='sum' then / 2B).
# ----------------------------------------------------------------------------
def nt_xent_loss_ref(zis, zjs, temperature, use_cosine_similarity=False):
    b = zis.shape[0]
    n = 2 * b
    z = np.asarray(jnp.concatenate([zis, zjs], axis=0), dtype=np.float64)
    if use_cosine_similarity:
        z = z / np.linalg.norm(z, axis=1, keepdims=True)
    s = z @ z.T
    l_pos = np.diagonal(s, offset=b)
    positives = np.concatenate([l_pos, l_pos]).reshape(n, 1)
    mask = (1 - (np.eye(n) + np.eye(n, k=-b) + np.eye(n, k=b))).astype(bool)
    negatives = s[mask].reshape(n, n - 2)
    logits = np.concatenate([positives, negatives], axis=1) / temperature
    m = logits.max(axis=1, keepdims=True)
    lse = np.log(np.exp(logits - m).sum(axis=1, keepdims=True)) + m
    loss = (lse[:, 0] - logits[:, 0]).sum()
    return loss / n


if __name__ == "__main__":
    key = jax.random.PRNGKey(0)
    k1, k2, k3, k4, k5, k6 = jax.random.split(key, 6)

    def check(loss, ref, tag):
        loss = float(loss)
        ref = float(ref)
        assert np.isfinite(loss), (tag, loss)
        assert abs(loss - ref) <= 5e-2 * max(1.0, abs(ref)), (tag, loss, ref)

    # 1) small config, dot similarity (module ctor: temperature=0.5)
    b1, d1, t1 = 4, 32, 0.5
    zis1 = 0.5 * jax.random.normal(k1, (b1, d1), jnp.float32)
    zjs1 = 0.5 * jax.random.normal(k2, (b1, d1), jnp.float32)
    loss1 = jax.jit(functools.partial(nt_xent_loss, temperature=t1))(zis1, zjs1)
    jax.block_until_ready(loss1)
    check(loss1, nt_xent_loss_ref(zis1, zjs1, t1), "dot-small")

    # 2) cosine similarity + row/col padding (B not multiple of 64, D not of 128)
    b2, d2, t2 = 50, 48, 0.2
    zis2 = jax.random.normal(k3, (b2, d2), jnp.float32)
    zjs2 = jax.random.normal(k4, (b2, d2), jnp.float32)
    loss2 = jax.jit(functools.partial(nt_xent_loss, temperature=t2,
                                      use_cosine_similarity=True))(zis2, zjs2)
    jax.block_until_ready(loss2)
    check(loss2, nt_xent_loss_ref(zis2, zjs2, t2, use_cosine_similarity=True), "cos-pad")

    # 3) multiple row tiles + multiple column chunks (online-logsumexp fori_loop path)
    b3, d3, t3 = 96, 32, 0.5
    zis3 = 0.2 * jax.random.normal(k5, (b3, d3), jnp.float32)
    zjs3 = 0.2 * jax.random.normal(k6, (b3, d3), jnp.float32)
    loss3 = jax.jit(functools.partial(nt_xent_loss, temperature=t3,
                                      row_block=64, col_block=128))(zis3, zjs3)
    jax.block_until_ready(loss3)
    check(loss3, nt_xent_loss_ref(zis3, zjs3, t3), "dot-multitile")

    print("KERNEL_OK")
</pallas_src>

<mosaic_0001>
module attributes {stable_mosaic.version = 11 : i64} {
  func.func @_ntxent_kernel(%arg0: i32, %arg1: memref<128x128xbf16, #tpu.memory_space<vmem>>, %arg2: memref<64x1xf32, #tpu.memory_space<vmem>>) attributes {dimension_semantics = [#tpu.dimension_semantics<parallel>], iteration_bounds = array<i64: 2>, scalar_prefetch = 0 : i64, scratch_operands = 0 : i64, tpu.core_type = #tpu.core_type<tc>, window_params = [{pipeline_mode = #tpu.pipeline_mode<synchronous>, transform_indices = @transform_0, window_bounds = array<i64: 128, 128>}, {transform_indices = @transform_1, window_bounds = array<i64: 64, 1>}]} {
    %c64_i32 = arith.constant 64 : i32
    %0 = arith.muli %arg0, %c64_i32 : i32
    %1 = tpu.assume_multiple %0, 64 : i32
    %2 = arith.index_cast %1 : i32 to index
    %c0 = arith.constant 0 : index
    %3 = vector.load %arg1[%2, %c0] : memref<128x128xbf16, #tpu.memory_space<vmem>>, vector<64x128xbf16>
    %c64_i32_0 = arith.constant 64 : i32
    %4 = arith.cmpi slt, %0, %c64_i32_0 : i32
    %c64_i32_1 = arith.constant 64 : i32
    %5 = arith.addi %0, %c64_i32_1 : i32
    %c64_i32_2 = arith.constant 64 : i32
    %6 = arith.subi %0, %c64_i32_2 : i32
    %7 = arith.select %4, %5, %6 : i32
    %8 = tpu.assume_multiple %7, 64 : i32
    %9 = arith.index_cast %8 : i32 to index
    %c0_3 = arith.constant 0 : index
    %10 = vector.load %arg1[%9, %c0_3] : memref<128x128xbf16, #tpu.memory_space<vmem>>, vector<64x128xbf16>
    %cst = arith.constant 2.000000e+00 : bf16
    %11 = vector.broadcast %cst : bf16 to vector<64x128xbf16>
    %12 = arith.mulf %3, %11 : vector<64x128xbf16>
    %13 = arith.extf %3 : vector<64x128xbf16> to vector<64x128xf32>
    %14 = arith.extf %10 : vector<64x128xbf16> to vector<64x128xf32>
    %15 = arith.mulf %13, %14 : vector<64x128xf32>
    %cst_4 = arith.constant dense<0.000000e+00> : vector<64xf32>
    %16 = vector.multi_reduction <add>, %15, %cst_4 [1] : vector<64x128xf32> to vector<64xf32>
    %17 = vector.shape_cast %16 : vector<64xf32> to vector<64x1xf32>
    %cst_5 = arith.constant 2.000000e+00 : f32
    %18 = vector.broadcast %cst_5 : f32 to vector<64x1xf32>
    %19 = arith.mulf %17, %18 : vector<64x1xf32>
    %20 = tpu.iota {dimensions = array<i32: 0>} : vector<64x1xi32>
    %21 = vector.broadcast %0 : i32 to vector<64x1xi32>
    %22 = arith.addi %21, %20 : vector<64x1xi32>
    %cst_6 = arith.constant -1.000000e+30 : f32
    %23 = vector.broadcast %cst_6 : f32 to vector<64x1xf32>
    %cst_7 = arith.constant 0.000000e+00 : f32
    %24 = vector.broadcast %cst_7 : f32 to vector<64x1xf32>
    %c0_8 = arith.constant 0 : index
    %c0_9 = arith.constant 0 : index
    %25 = vector.load %arg1[%c0_8, %c0_9] : memref<128x128xbf16, #tpu.memory_space<vmem>>, vector<128x128xbf16>
    %cst_10 = arith.constant dense<0.000000e+00> : vector<64x128xf32>
    %26 = tpu.matmul %12, %25, %cst_10 {dimension_numbers = #tpu.dot_dimension_numbers<[1], [1], [0], [0], [0, 0, 1, 0], [], []>} : vector<64x128xbf16>, vector<128x128xbf16>, vector<64x128xf32> -> vector<64x128xf32>
    %27 = tpu.iota {dimensions = array<i32: 1>} : vector<1x128xi32>
    %c0_i32 = arith.constant 0 : i32
    %28 = vector.broadcast %c0_i32 : i32 to vector<1x128xi32>
    %29 = arith.addi %28, %27 : vector<1x128xi32>
    %30 = vector.broadcast %22 : vector<64x1xi32> to vector<64x128xi32>
    %31 = vector.broadcast %29 : vector<1x128xi32> to vector<64x128xi32>
    %32 = arith.cmpi eq, %30, %31 : vector<64x128xi32>
    %c4_i32 = arith.constant 4 : i32
    %33 = vector.broadcast %c4_i32 : i32 to vector<1x128xi32>
    %34 = arith.cmpi slt, %29, %33 : vector<1x128xi32>
    %c64_i32_11 = arith.constant 64 : i32
    %35 = vector.broadcast %c64_i32_11 : i32 to vector<1x128xi32>
    %36 = arith.cmpi sge, %29, %35 : vector<1x128xi32>
    %c68_i32 = arith.constant 68 : i32
    %37 = vector.broadcast %c68_i32 : i32 to vector<1x128xi32>
    %38 = arith.cmpi slt, %29, %37 : vector<1x128xi32>
    %39 = arith.andi %36, %38 : vector<1x128xi1>
    %40 = arith.ori %34, %39 : vector<1x128xi1>
    %cst_12 = arith.constant dense<true> : vector<1x128xi1>
    %41 = arith.xori %40, %cst_12 : vector<1x128xi1>
    %42 = vector.broadcast %41 : vector<1x128xi1> to vector<64x128xi1>
    %43 = arith.ori %32, %42 : vector<64x128xi1>
    %cst_13 = arith.constant -2.000000e+30 : f32
    %44 = vector.broadcast %cst_13 : f32 to vector<64x128xf32>
    %45 = arith.select %43, %44, %26 : vector<64x128xi1>, vector<64x128xf32>
    %cst_14 = arith.constant dense<0xFF800000> : vector<64xf32>
    %46 = vector.multi_reduction <maximumf>, %45, %cst_14 [1] : vector<64x128xf32> to vector<64xf32>
    %47 = vector.shape_cast %46 : vector<64xf32> to vector<64x1xf32>
    %48 = arith.maximumf %23, %47 : vector<64x1xf32>
    %49 = arith.subf %23, %48 : vector<64x1xf32>
    %50 = math.exp %49 : vector<64x1xf32>
    %51 = arith.mulf %24, %50 : vector<64x1xf32>
    %52 = vector.broadcast %48 : vector<64x1xf32> to vector<64x128xf32>
    %53 = arith.subf %45, %52 : vector<64x128xf32>
    %54 = math.exp %53 : vector<64x128xf32>
    %cst_15 = arith.constant dense<0.000000e+00> : vector<64xf32>
    %55 = vector.multi_reduction <add>, %54, %cst_15 [1] : vector<64x128xf32> to vector<64xf32>
    %56 = vector.shape_cast %55 : vector<64xf32> to vector<64x1xf32>
    %57 = arith.addf %51, %56 : vector<64x1xf32>
    %58 = math.log %57 : vector<64x1xf32>
    %59 = arith.addf %48, %58 : vector<64x1xf32>
    %60 = arith.subf %59, %19 : vector<64x1xf32>
    %c4_i32_16 = arith.constant 4 : i32
    %61 = vector.broadcast %c4_i32_16 : i32 to vector<64x1xi32>
    %62 = arith.cmpi slt, %22, %61 : vector<64x1xi32>
    %c64_i32_17 = arith.constant 64 : i32
    %63 = vector.broadcast %c64_i32_17 : i32 to vector<64x1xi32>
    %64 = arith.cmpi sge, %22, %63 : vector<64x1xi32>
    %c68_i32_18 = arith.constant 68 : i32
    %65 = vector.broadcast %c68_i32_18 : i32 to vector<64x1xi32>
    %66 = arith.cmpi slt, %22, %65 : vector<64x1xi32>
    %67 = arith.andi %64, %66 : vector<64x1xi1>
    %68 = arith.ori %62, %67 : vector<64x1xi1>
    %cst_19 = arith.constant 0.000000e+00 : f32
    %69 = vector.broadcast %cst_19 : f32 to vector<64x1xf32>
    %70 = arith.select %68, %60, %69 : vector<64x1xi1>, vector<64x1xf32>
    %c0_20 = arith.constant 0 : index
    %c0_21 = arith.constant 0 : index
    %71 = vector.load %arg2[%c0_20, %c0_21] : memref<64x1xf32, #tpu.memory_space<vmem>>, vector<64x1xf32>
    tpu.vector_store %arg2[%c0_20, %c0_21], %70 {strides = array<i32>} : memref<64x1xf32, #tpu.memory_space<vmem>>, vector<64x1xf32>,
    return
  }
  func.func @transform_0(%arg0: i32) -> (i32, i32) {
    %c0_i32 = arith.constant 0 : i32
    %c0_i32_0 = arith.constant 0 : i32
    %c0_i32_1 = arith.constant 0 : i32
    return %c0_i32, %c0_i32_0 : i32, i32
  }
  func.func @transform_1(%arg0: i32) -> (i32, i32) {
    %c0_i32 = arith.constant 0 : i32
    %c0_i32_0 = arith.constant 0 : i32
    return %arg0, %c0_i32 : i32, i32
  }
}

</mosaic_0001>

<llo_original>
// kernel: nt_xent_loss.1
$region0: #{nt_xent_loss.1}
  #allocation0 [shape = 'u32[]', space=smem, size = 0x4, offset = 0x4, fixed_abs, tag = 'smem constant byte address 0x4 - core index']
  #allocation1 [shape = 'u32[144,128]{1,0:T(1,128)}', space=vmem, size = 0x12000, scoped, tag = 'internal scratch']
  %s0 = inlined_call_operand.vmem [shape: bf16[128,128], index: 0, kind: input, shape index: {}]
  %s1 = inlined_call_operand.vmem [shape: f32[128,1], index: 1, kind: output, shape index: {}]
  %s2 = sld [smem:[#allocation0]]
  $region37: #{nt_xent_loss.1} parent=0
    _
  %s4 = ssub.s32 1, %s2
  %s5 = scalar_select 0, %s4, %s2
  loop: start=0, step=1, limit=4
  $region2: #{nt_xent_loss.1} parent=0 // loop_pre_header
    _
  $region3: #{nt_xent_loss.1} parent=0 // loop_header
    %s7 = sphi 0, %s11
    %p8 = scmp.ge.s32.totalorder %s7, 4
    %s15 = sphi 0, %s15
    %s17 = sphi 0, %s15
    %s18 = sphi 0, %s17
    %s32 = sphi 0, %s18
    %s38 = sphi 0, %s40
    %s41 = sphi 0, %s38
    %s42 = sphi 0, %s41
    %s58 = sphi 0, %s42
  $region4: #{nt_xent_loss.1} parent=0 // loop_header_branch
    %10 = sbr.rel (%p8) target = $region8
  $region5: #{nt_xent_loss.1} parent=0 // loop_body
    %s12 = ssub.s32 %s7, 1
    %s13 = ssub.s32 %s7, 2
    %s14 = sadd.s32 %s7, 1
    %s16 = sadd.s32 %s15, 1
    %p19 = scmp.eq.s32.totalorder %s7, 1
    %p20 = scmp.ne.s32.totalorder %s15, %s17
    %p21 = scmp.eq.s32.totalorder %s7, 0
    %p22 = por %p20, %p21
    %p23 = scmp.ne.s32.totalorder %s15, %s17
    %p24 = scmp.eq.s32.totalorder %s12, 1
    %p25 = por %p23, %p24
    %p26 = scmp.ne.s32.totalorder %s17, %s18
    %p27 = scmp.eq.s32.totalorder %s12, 0
    %p28 = por %p26, %p27
    %p29 = scmp.ne.s32.totalorder %s17, %s18
    %p30 = scmp.eq.s32.totalorder %s13, 1
    %p31 = por %p29, %p30
    %p33 = scmp.ne.s32.totalorder %s18, %s32
    %p34 = scmp.eq.s32.totalorder %s13, 0
    %p35 = por %p33, %p34
    %s36 = ssub.s32 %s7, %s14
    %p37 = scmp.eq.s32.totalorder %s36, 0
    %s39 = sadd.s32 %s38, 1
    %s40 = scalar_select %p37, %s38, %s39
    %p43 = pneg %p37
    %p44 = scmp.eq.s32.totalorder %s7, 1
    %p45 = por %p43, %p44
    %p46 = scmp.ne.s32.totalorder %s38, %s41
    %p47 = scmp.eq.s32.totalorder %s7, 0
    %p48 = por %p46, %p47
    %p49 = scmp.ne.s32.totalorder %s38, %s41
    %p50 = scmp.eq.s32.totalorder %s12, 1
    %p51 = por %p49, %p50
    %p52 = scmp.ne.s32.totalorder %s41, %s42
    %p53 = scmp.eq.s32.totalorder %s12, 0
    %p54 = por %p52, %p53
    %p55 = scmp.ne.s32.totalorder %s41, %s42
    %p56 = scmp.eq.s32.totalorder %s13, 1
    %p57 = por %p55, %p56
    %p59 = scmp.ne.s32.totalorder %s42, %s58
    %p60 = scmp.eq.s32.totalorder %s13, 0
    %p61 = por %p59, %p60
    %p62 = scmp.le.s32.totalorder 1, %s7
    %p63 = scmp.lt.s32.totalorder %s7, 3
    %p64 = pnand %p62, %p63
    %p65 = pneg %p64
    // Predicated region
    $region9: #{nt_xent_loss.1} parent=5 // pred_check
      _
    $region10: #{nt_xent_loss.1} parent=5 // pred_check_branch
      %67 = sbr.rel (%p64) target = $region12
    $region11: #{nt_xent_loss.1} parent=5 // pred_region
      %s68 = ssub.s32 %s7, 1
      // Predicated region
      $region13: #{nt_xent_loss.1} parent=11 // pred_check
        %p69 = pneg %p28
      $region14: #{nt_xent_loss.1} parent=11 // pred_check_branch
        %71 = sbr.rel (%p69) target = $region16
      $region15: #{nt_xent_loss.1} parent=11 // pred_region
        _
      $region16: #{nt_xent_loss.1} parent=11 // pred_fallthru
        _
    $region12: #{nt_xent_loss.1} parent=5 // pred_fallthru
      _
    %p72 = scmp.lt.s32.totalorder %s7, 2
    // Predicated region
    $region17: #{nt_xent_loss.1} parent=5 // pred_check
      %p73 = pneg %p72
    $region18: #{nt_xent_loss.1} parent=5 // pred_check_branch
      %75 = sbr.rel (%p73) target = $region20
    $region19: #{nt_xent_loss.1} parent=5 // pred_region
      _
    $region20: #{nt_xent_loss.1} parent=5 // pred_fallthru
      _
    %p76 = scmp.le.s32.totalorder 1, %s7
    %p77 = scmp.lt.s32.totalorder %s7, 3
    %p78 = pnand %p76, %p77
    %p79 = pneg %p78
    // Predicated region
    $region21: #{nt_xent_loss.1} parent=5 // pred_check
      _
    $region22: #{nt_xent_loss.1} parent=5 // pred_check_branch
      %81 = sbr.rel (%p78) target = $region24
    $region23: #{nt_xent_loss.1} parent=5 // pred_region
      %s82 = ssub.s32 %s7, 1
      %p83 = pneg %p28
      %p84 = pneg %p25
      %p85 = pneg %p54
      %p86 = pneg %p51
      %s87 = smul.u32 8, %s12
      %p88 = scmp.lt.s32.totalorder %s87, 15
      %s89 = scalar_select %p88, %s87, 15
      %s90 = smul.addr %s89, 8
      %s91 = scalar_lea.vmem %s1, %s90
      %s92 = smul.u32 8, %s12
      %p93 = scmp.lt.s32.totalorder %s92, 15
      %s94 = scalar_select %p93, %s92, 15
      %s95 = smul.addr %s94, 8
      %s96 = scalar_lea.vmem %s1, %s95
      %s97 = smul.u32 8, %s12
      %s100 = smul.u32 %s12, 64
      %s101 = sshra.s32 %s100, 3
      %s102 = sand.u32 %s100, 7
      %s103 = smul.addr %s101, 4
      %s104 = scalar_lea.vmem %s0, %s103
      %v105 = vld [vmem:[%s104] sm:$0xf]
      %v106 = vld [vmem:[%s104 + $0x4] sm:$0xf]
      %v107 = vld [vmem:[%s104 + $0x8] sm:$0xf]
      %v108 = vld [vmem:[%s104 + $0xc] sm:$0xf]
      %v109 = vld [vmem:[%s104 + $0x10] sm:$0xf]
      %v110 = vld [vmem:[%s104 + $0x14] sm:$0xf]
      %v111 = vld [vmem:[%s104 + $0x18] sm:$0xf]
      %v112 = vld [vmem:[%s104 + $0x1c] sm:$0xf]
      %p113 = scmp.lt.s32.totalorder %s100, 64
      %s114 = sadd.s32 %s100, 64
      %s115 = ssub.s32 %s100, 64
      %s116 = scalar_select %p113, %s114, %s115
      %s117 = sshra.s32 %s116, 3
      %s118 = sand.u32 %s116, 7
      %s119 = smul.addr %s117, 4
      %s120 = scalar_lea.vmem %s0, %s119
      %v121 = vld [vmem:[%s120] sm:$0xf]
      %v122 = vld [vmem:[%s120 + $0x4] sm:$0xf]
      %v123 = vld [vmem:[%s120 + $0x8] sm:$0xf]
      %v124 = vld [vmem:[%s120 + $0xc] sm:$0xf]
      %v125 = vld [vmem:[%s120 + $0x10] sm:$0xf]
      %v126 = vld [vmem:[%s120 + $0x14] sm:$0xf]
      %v127 = vld [vmem:[%s120 + $0x18] sm:$0xf]
      %v128 = vld [vmem:[%s120 + $0x1c] sm:$0xf]
      %v129 = vmul.bf16 %v105, 1073758208
      %v130 = vmul.bf16 %v106, 1073758208
      %v131 = vmul.bf16 %v107, 1073758208
      %v132 = vmul.bf16 %v108, 1073758208
      %v133 = vmul.bf16 %v109, 1073758208
      %v134 = vmul.bf16 %v110, 1073758208
      %v135 = vmul.bf16 %v111, 1073758208
      %v136 = vmul.bf16 %v112, 1073758208
      %v137 = vunpack.c.l.bf16 %v105
      %v138 = vunpack.c.l.bf16 %v106
      %v139 = vunpack.c.l.bf16 %v107
      %v140 = vunpack.c.l.bf16 %v108
      %v141 = vunpack.c.l.bf16 %v109
      %v142 = vunpack.c.l.bf16 %v110
      %v143 = vunpack.c.l.bf16 %v111
      %v144 = vunpack.c.l.bf16 %v112
      %v145 = vunpack.c.l.bf16 %v121
      %v146 = vunpack.c.l.bf16 %v122
      %v147 = vunpack.c.l.bf16 %v123
      %v148 = vunpack.c.l.bf16 %v124
      %v149 = vunpack.c.l.bf16 %v125
      %v150 = vunpack.c.l.bf16 %v126
      %v151 = vunpack.c.l.bf16 %v127
      %v152 = vunpack.c.l.bf16 %v128
      %v153 = vmul.f32 %v137, %v145
      %v154 = vmul.f32 %v138, %v146
      %v155 = vmul.f32 %v139, %v147
      %v156 = vmul.f32 %v140, %v148
      %v157 = vmul.f32 %v141, %v149
      %v158 = vmul.f32 %v142, %v150
      %v159 = vmul.f32 %v143, %v151
      %v160 = vmul.f32 %v144, %v152
      %161 = vadd.xlane.f32.xlu0 %v153
      %v162 = vpop.xlane.xlu0 %161
      %163 = vadd.xlane.f32.xlu0 %v154
      %v164 = vpop.xlane.xlu0 %163
      %165 = vadd.xlane.f32.xlu0 %v155
      %v166 = vpop.xlane.xlu0 %165
      %167 = vadd.xlane.f32.xlu0 %v156
      %v168 = vpop.xlane.xlu0 %167
      %169 = vadd.xlane.f32.xlu0 %v157
      %v170 = vpop.xlane.xlu0 %169
      %171 = vadd.xlane.f32.xlu0 %v158
      %v172 = vpop.xlane.xlu0 %171
      %173 = vadd.xlane.f32.xlu0 %v159
      %v174 = vpop.xlane.xlu0 %173
      %175 = vadd.xlane.f32.xlu0 %v160
      %v176 = vpop.xlane.xlu0 %175
      %v177 = vmul.f32 %v162, 2.0
      %v178 = vmul.f32 %v164, 2.0
      %v179 = vmul.f32 %v166, 2.0
      %v180 = vmul.f32 %v168, 2.0
      %v181 = vmul.f32 %v170, 2.0
      %v182 = vmul.f32 %v172, 2.0
      %v183 = vmul.f32 %v174, 2.0
      %v184 = vmul.f32 %v176, 2.0
      %v185 = vlaneseq
      %v186 = vshrl.u32 %v185, 7
      %v187 = vadd.s32 %v186, 8
      %v188 = vadd.s32 %v186, 16
      %v189 = vadd.s32 %v186, 24
      %v190 = vadd.s32 %v186, 32
      %v191 = vadd.s32 %v186, 40
      %v192 = vadd.s32 %v186, 48
      %v193 = vadd.s32 %v186, 56
      %v194 = vstv %s100
      %v195 = vadd.s32 %v194, %v186
      %v196 = vadd.s32 %v194, %v187
      %v197 = vadd.s32 %v194, %v188
      %v198 = vadd.s32 %v194, %v189
      %v199 = vadd.s32 %v194, %v190
      %v200 = vadd.s32 %v194, %v191
      %v201 = vadd.s32 %v194, %v192
      %v202 = vadd.s32 %v194, %v193
      %v203 = vld [vmem:[%s0] sm:$0xf]
      %v204 = vld [vmem:[%s0 + $0x4] sm:$0xf]
      %v205 = vld [vmem:[%s0 + $0x8] sm:$0xf]
      %v206 = vld [vmem:[%s0 + $0xc] sm:$0xf]
      %v207 = vld [vmem:[%s0 + $0x10] sm:$0xf]
      %v208 = vld [vmem:[%s0 + $0x14] sm:$0xf]
      %v209 = vld [vmem:[%s0 + $0x18] sm:$0xf]
      %v210 = vld [vmem:[%s0 + $0x1c] sm:$0xf]
      %v211 = vld [vmem:[%s0 + $0x20] sm:$0xf]
      %v212 = vld [vmem:[%s0 + $0x24] sm:$0xf]
      %v213 = vld [vmem:[%s0 + $0x28] sm:$0xf]
      %v214 = vld [vmem:[%s0 + $0x2c] sm:$0xf]
      %v215 = vld [vmem:[%s0 + $0x30] sm:$0xf]
      %v216 = vld [vmem:[%s0 + $0x34] sm:$0xf]
      %v217 = vld [vmem:[%s0 + $0x38] sm:$0xf]
      %v218 = vld [vmem:[%s0 + $0x3c] sm:$0xf]
      %v227 = vunpack.c.l.b16 %v129
      %v228 = vunpack.c.l.b16 %v130
      %v229 = vunpack.c.l.b16 %v131
      %v230 = vunpack.c.l.b16 %v132
      %v231 = vunpack.c.l.b16 %v133
      %v232 = vunpack.c.l.b16 %v134
      %v233 = vunpack.c.l.b16 %v135
      %v234 = vunpack.c.l.b16 %v136
      %v235 = vpack.c.b16 %v228, %v227
      %v236 = vpack.c.b16 %v230, %v229
      %v237 = vpack.c.b16 %v232, %v231
      %v238 = vpack.c.b16 %v234, %v233
      %v259 = vunpack.c.l.b16 %v203
      %v260 = vunpack.c.l.b16 %v204
      %v261 = vunpack.c.l.b16 %v205
      %v262 = vunpack.c.l.b16 %v206
      %v263 = vunpack.c.l.b16 %v207
      %v264 = vunpack.c.l.b16 %v208
      %v265 = vunpack.c.l.b16 %v209
      %v266 = vunpack.c.l.b16 %v210
      %v267 = vunpack.c.l.b16 %v211
      %v268 = vunpack.c.l.b16 %v212
      %v269 = vunpack.c.l.b16 %v213
      %v270 = vunpack.c.l.b16 %v214
      %v271 = vunpack.c.l.b16 %v215
      %v272 = vunpack.c.l.b16 %v216
      %v273 = vunpack.c.l.b16 %v217
      %v274 = vunpack.c.l.b16 %v218
      %v275 = vpack.c.b16 %v260, %v259
      %v276 = vpack.c.b16 %v262, %v261
      %v277 = vpack.c.b16 %v264, %v263
      %v278 = vpack.c.b16 %v266, %v265
      %v279 = vpack.c.b16 %v268, %v267
      %v280 = vpack.c.b16 %v270, %v269
      %v281 = vpack.c.b16 %v272, %v271
      %v282 = vpack.c.b16 %v274, %v273
      %291 = vmatprep.subr.bf16.mxu0 0
      %292 = vmatpush1.bf16.xpose.msra.mxu0 %v275
      %293 = vmatprep.subr.bf16.mxu0 0
      %294 = vmatpush1.bf16.xpose.msra.mxu0 %v276
      %295 = vmatprep.subr.bf16.mxu0 0
      %296 = vmatpush1.bf16.xpose.msra.mxu0 %v277
      %297 = vmatprep.subr.bf16.mxu0 0
      %298 = vmatpush1.bf16.xpose.msra.mxu0 %v278
      %299 = vmatprep.subr.bf16.mxu0 0
      %300 = vmatpush1.bf16.xpose.msra.mxu0 %v279
      %301 = vmatprep.subr.bf16.mxu0 0
      %302 = vmatpush1.bf16.xpose.msra.mxu0 %v280
      %303 = vmatprep.subr.bf16.mxu0 0
      %304 = vmatpush1.bf16.xpose.msra.mxu0 %v281
      %305 = vmatprep.subr.bf16.mxu0 0
      %306 = vmatpush1.bf16.xpose.msra.mxu0 %v282
      %307 = vmatprep.subr.bf16.mxu0 0
      %308 = vmatpush1.bf16.xpose.msra.mxu0 0
      %309 = vmatprep.subr.bf16.mxu0 0
      %310 = vmatpush1.bf16.xpose.msra.mxu0 0
      %311 = vmatprep.subr.bf16.mxu0 0
      %312 = vmatpush1.bf16.xpose.msra.mxu0 0
      %313 = vmatprep.subr.bf16.mxu0 0
      %314 = vmatpush1.bf16.xpose.msra.mxu0 0
      %315 = vmatprep.subr.bf16.mxu0 0
      %316 = vmatpush1.bf16.xpose.msra.mxu0 0
      %317 = vmatprep.subr.bf16.mxu0 0
      %318 = vmatpush1.bf16.xpose.msra.mxu0 0
      %319 = vmatprep.subr.bf16.mxu0 0
      %320 = vmatpush1.bf16.xpose.msra.mxu0 0
      %321 = vmatprep.subr.bf16.mxu0 0
      %322 = vmatpush1.bf16.xpose.msra.mxu0 0
      %323 = vmatprep.mubr.bf16.mxu0 0
      %324 = vmatmul.mubr.bf16.gmra.mrb[0].mxu0 %v235
      %v325 = vpop.f32.mrb[0].mxu0
      %v326 = vadd.f32 0.0, %v325
      %v327 = vpop.f32.mrb[0].mxu0
      %v328 = vpop.f32.mrb[0].mxu0
      %v329 = vadd.f32 0.0, %v328
      %v330 = vpop.f32.mrb[0].mxu0
      %331 = vmatprep.mubr.bf16.mxu0 0
      %332 = vmatmul.mubr.bf16.gmra.mrb[0].mxu0 %v236
      %v333 = vpop.f32.mrb[0].mxu0
      %v334 = vadd.f32 0.0, %v333
      %v335 = vpop.f32.mrb[0].mxu0
      %v336 = vpop.f32.mrb[0].mxu0
      %v337 = vadd.f32 0.0, %v336
      %v338 = vpop.f32.mrb[0].mxu0
      %339 = vmatprep.mubr.bf16.mxu0 0
      %340 = vmatmul.mubr.bf16.gmra.mrb[0].mxu0 %v237
      %v341 = vpop.f32.mrb[0].mxu0
      %v342 = vadd.f32 0.0, %v341
      %v343 = vpop.f32.mrb[0].mxu0
      %v344 = vpop.f32.mrb[0].mxu0
      %v345 = vadd.f32 0.0, %v344
      %v346 = vpop.f32.mrb[0].mxu0
      %347 = vmatprep.mubr.bf16.mxu0 0
      %348 = vmatmul.mubr.bf16.gmra.mrb[0].mxu0 %v238
      %v349 = vpop.f32.mrb[0].mxu0
      %v350 = vadd.f32 0.0, %v349
      %v351 = vpop.f32.mrb[0].mxu0
      %v352 = vpop.f32.mrb[0].mxu0
      %v353 = vadd.f32 0.0, %v352
      %v354 = vpop.f32.mrb[0].mxu0
      %355 = vdwg.mxu0
      %v356 = vlaneseq
      %v357 = vand.u32 %v356, 127
      %vm358 = vcmp.eq.s32.totalorder %v195, %v357
      %vm359 = vcmp.eq.s32.totalorder %v196, %v357
      %vm360 = vcmp.eq.s32.totalorder %v197, %v357
      %vm361 = vcmp.eq.s32.totalorder %v198, %v357
      %vm362 = vcmp.eq.s32.totalorder %v199, %v357
      %vm363 = vcmp.eq.s32.totalorder %v200, %v357
      %vm364 = vcmp.eq.s32.totalorder %v201, %v357
      %vm365 = vcmp.eq.s32.totalorder %v202, %v357
      %vm366 = vcmp.lt.s32.totalorder %v357, 4
      %vm367 = vcmp.ge.s32.totalorder %v357, 64
      %vm368 = vcmp.lt.s32.totalorder %v357, 68
      %vm369 = vmand %vm367, %vm368
      %vm370 = vmor %vm366, %vm369
      %vm371 = vmxor %vm370, 1
      %v372 = vsel %vm371, 1, 0
      %vm373 = vcmp.eq.s32.totalorder %v372, 1
      %vm374 = vmor %vm358, %vm373
      %vm375 = vmor %vm359, %vm373
      %vm376 = vmor %vm360, %vm373
      %vm377 = vmor %vm361, %vm373
      %vm378 = vmor %vm362, %vm373
      %vm379 = vmor %vm363, %vm373
      %vm380 = vmor %vm364, %vm373
      %vm381 = vmor %vm365, %vm373
      %v382 = vsel %vm374, -2e+30, %v326
      %v383 = vsel %vm375, -2e+30, %v329
      %v384 = vsel %vm376, -2e+30, %v334
      %v385 = vsel %vm377, -2e+30, %v337
      %v386 = vsel %vm378, -2e+30, %v342
      %v387 = vsel %vm379, -2e+30, %v345
      %v388 = vsel %vm380, -2e+30, %v350
      %v389 = vsel %vm381, -2e+30, %v353
      %390 = vmax.xlane.f32.xlu0 %v382
      %v391 = vpop.xlane.xlu0 %390
      %392 = vmax.xlane.f32.xlu0 %v383
      %v393 = vpop.xlane.xlu0 %392
      %394 = vmax.xlane.f32.xlu0 %v384
      %v395 = vpop.xlane.xlu0 %394
      %396 = vmax.xlane.f32.xlu0 %v385
      %v397 = vpop.xlane.xlu0 %396
      %398 = vmax.xlane.f32.xlu0 %v386
      %v399 = vpop.xlane.xlu0 %398
      %400 = vmax.xlane.f32.xlu0 %v387
      %v401 = vpop.xlane.xlu0 %400
      %402 = vmax.xlane.f32.xlu0 %v388
      %v403 = vpop.xlane.xlu0 %402
      %404 = vmax.xlane.f32.xlu0 %v389
      %v405 = vpop.xlane.xlu0 %404
      %v406 = vmax.f32 %v391, -1e+30
      %v407 = vmax.f32 %v393, -1e+30
      %v408 = vmax.f32 %v395, -1e+30
      %v409 = vmax.f32 %v397, -1e+30
      %v410 = vmax.f32 %v399, -1e+30
      %v411 = vmax.f32 %v401, -1e+30
      %v412 = vmax.f32 %v403, -1e+30
      %v413 = vmax.f32 %v405, -1e+30
      %v414 = vsub.f32 -1e+30, %v406
      %v415 = vsub.f32 -1e+30, %v407
      %v416 = vsub.f32 -1e+30, %v408
      %v417 = vsub.f32 -1e+30, %v409
      %v418 = vsub.f32 -1e+30, %v410
      %v419 = vsub.f32 -1e+30, %v411
      %v420 = vsub.f32 -1e+30, %v412
      %v421 = vsub.f32 -1e+30, %v413
      %v422 = vmul.f32 %v414, 1.442695
      %v423 = vpow.pop %v422
      %v424 = vmul.f32 %v415, 1.442695
      %v425 = vpow.pop %v424
      %v426 = vmul.f32 %v416, 1.442695
      %v427 = vpow.pop %v426
      %v428 = vmul.f32 %v417, 1.442695
      %v429 = vpow.pop %v428
      %v430 = vmul.f32 %v418, 1.442695
      %v431 = vpow.pop %v430
      %v432 = vmul.f32 %v419, 1.442695
      %v433 = vpow.pop %v432
      %v434 = vmul.f32 %v420, 1.442695
      %v435 = vpow.pop %v434
      %v436 = vmul.f32 %v421, 1.442695
      %v437 = vpow.pop %v436
      %v438 = vmul.f32 %v423, 0.0
      %v439 = vmul.f32 %v425, 0.0
      %v440 = vmul.f32 %v427, 0.0
      %v441 = vmul.f32 %v429, 0.0
      %v442 = vmul.f32 %v431, 0.0
      %v443 = vmul.f32 %v433, 0.0
      %v444 = vmul.f32 %v435, 0.0
      %v445 = vmul.f32 %v437, 0.0
      %v446 = vsub.f32 %v382, %v406
      %v447 = vsub.f32 %v383, %v407
      %v448 = vsub.f32 %v384, %v408
      %v449 = vsub.f32 %v385, %v409
      %v450 = vsub.f32 %v386, %v410
      %v451 = vsub.f32 %v387, %v411
      %v452 = vsub.f32 %v388, %v412
      %v453 = vsub.f32 %v389, %v413
      %v454 = vmul.f32 %v446, 1.442695
      %v455 = vpow.pop %v454
      %v456 = vmul.f32 %v447, 1.442695
      %v457 = vpow.pop %v456
      %v458 = vmul.f32 %v448, 1.442695
      %v459 = vpow.pop %v458
      %v460 = vmul.f32 %v449, 1.442695
      %v461 = vpow.pop %v460
      %v462 = vmul.f32 %v450, 1.442695
      %v463 = vpow.pop %v462
      %v464 = vmul.f32 %v451, 1.442695
      %v465 = vpow.pop %v464
      %v466 = vmul.f32 %v452, 1.442695
      %v467 = vpow.pop %v466
      %v468 = vmul.f32 %v453, 1.442695
      %v469 = vpow.pop %v468
      %470 = vadd.xlane.f32.xlu0 %v455
      %v471 = vpop.xlane.xlu0 %470
      %472 = vadd.xlane.f32.xlu0 %v457
      %v473 = vpop.xlane.xlu0 %472
      %474 = vadd.xlane.f32.xlu0 %v459
      %v475 = vpop.xlane.xlu0 %474
      %476 = vadd.xlane.f32.xlu0 %v461
      %v477 = vpop.xlane.xlu0 %476
      %478 = vadd.xlane.f32.xlu0 %v463
      %v479 = vpop.xlane.xlu0 %478
      %480 = vadd.xlane.f32.xlu0 %v465
      %v481 = vpop.xlane.xlu0 %480
      %482 = vadd.xlane.f32.xlu0 %v467
      %v483 = vpop.xlane.xlu0 %482
      %484 = vadd.xlane.f32.xlu0 %v469
      %v485 = vpop.xlane.xlu0 %484
      %v486 = vadd.f32 %v438, %v471
      %v487 = vadd.f32 %v439, %v473
      %v488 = vadd.f32 %v440, %v475
      %v489 = vadd.f32 %v441, %v477
      %v490 = vadd.f32 %v442, %v479
      %v491 = vadd.f32 %v443, %v481
      %v492 = vadd.f32 %v444, %v483
      %v493 = vadd.f32 %v445, %v485
      %v494 = vlog2.pop %v486
      %v495 = vmul.f32 %v494, 0.6931472
      %v496 = vlog2.pop %v487
      %v497 = vmul.f32 %v496, 0.6931472
      %v498 = vlog2.pop %v488
      %v499 = vmul.f32 %v498, 0.6931472
      %v500 = vlog2.pop %v489
      %v501 = vmul.f32 %v500, 0.6931472
      %v502 = vlog2.pop %v490
      %v503 = vmul.f32 %v502, 0.6931472
      %v504 = vlog2.pop %v491
      %v505 = vmul.f32 %v504, 0.6931472
      %v506 = vlog2.pop %v492
      %v507 = vmul.f32 %v506, 0.6931472
      %v508 = vlog2.pop %v493
      %v509 = vmul.f32 %v508, 0.6931472
      %v510 = vadd.f32 %v406, %v495
      %v511 = vadd.f32 %v407, %v497
      %v512 = vadd.f32 %v408, %v499
      %v513 = vadd.f32 %v409, %v501
      %v514 = vadd.f32 %v410, %v503
      %v515 = vadd.f32 %v411, %v505
      %v516 = vadd.f32 %v412, %v507
      %v517 = vadd.f32 %v413, %v509
      %v518 = vsub.f32 %v510, %v177
      %v519 = vsub.f32 %v511, %v178
      %v520 = vsub.f32 %v512, %v179
      %v521 = vsub.f32 %v513, %v180
      %v522 = vsub.f32 %v514, %v181
      %v523 = vsub.f32 %v515, %v182
      %v524 = vsub.f32 %v516, %v183
      %v525 = vsub.f32 %v517, %v184
      %vm526 = vcmp.lt.s32.totalorder %v195, 4
      %vm527 = vcmp.lt.s32.totalorder %v196, 4
      %vm528 = vcmp.lt.s32.totalorder %v197, 4
      %vm529 = vcmp.lt.s32.totalorder %v198, 4
      %vm530 = vcmp.lt.s32.totalorder %v199, 4
      %vm531 = vcmp.lt.s32.totalorder %v200, 4
      %vm532 = vcmp.lt.s32.totalorder %v201, 4
      %vm533 = vcmp.lt.s32.totalorder %v202, 4
      %vm534 = vcmp.ge.s32.totalorder %v195, 64
      %vm535 = vcmp.ge.s32.totalorder %v196, 64
      %vm536 = vcmp.ge.s32.totalorder %v197, 64
      %vm537 = vcmp.ge.s32.totalorder %v198, 64
      %vm538 = vcmp.ge.s32.totalorder %v199, 64
      %vm539 = vcmp.ge.s32.totalorder %v200, 64
      %vm540 = vcmp.ge.s32.totalorder %v201, 64
      %vm541 = vcmp.ge.s32.totalorder %v202, 64
      %vm542 = vcmp.lt.s32.totalorder %v195, 68
      %vm543 = vcmp.lt.s32.totalorder %v196, 68
      %vm544 = vcmp.lt.s32.totalorder %v197, 68
      %vm545 = vcmp.lt.s32.totalorder %v198, 68
      %vm546 = vcmp.lt.s32.totalorder %v199, 68
      %vm547 = vcmp.lt.s32.totalorder %v200, 68
      %vm548 = vcmp.lt.s32.totalorder %v201, 68
      %vm549 = vcmp.lt.s32.totalorder %v202, 68
      %vm550 = vmand %vm534, %vm542
      %vm551 = vmand %vm535, %vm543
      %vm552 = vmand %vm536, %vm544
      %vm553 = vmand %vm537, %vm545
      %vm554 = vmand %vm538, %vm546
      %vm555 = vmand %vm539, %vm547
      %vm556 = vmand %vm540, %vm548
      %vm557 = vmand %vm541, %vm549
      %vm558 = vmor %vm526, %vm550
      %vm559 = vmor %vm527, %vm551
      %vm560 = vmor %vm528, %vm552
      %vm561 = vmor %vm529, %vm553
      %vm562 = vmor %vm530, %vm554
      %vm563 = vmor %vm531, %vm555
      %vm564 = vmor %vm532, %vm556
      %vm565 = vmor %vm533, %vm557
      %v566 = vsel %vm558, %v518, 0.0
      %v567 = vsel %vm559, %v519, 0.0
      %v568 = vsel %vm560, %v520, 0.0
      %v569 = vsel %vm561, %v521, 0.0
      %v570 = vsel %vm562, %v522, 0.0
      %v571 = vsel %vm563, %v523, 0.0
      %v572 = vsel %vm564, %v524, 0.0
      %v573 = vsel %vm565, %v525, 0.0
      %vm574 = vcmask 7168
      %575 = vst.msk [vmem:[%s96] sm:$0xff] %vm574, %v566
      %576 = vst.msk [vmem:[%s96 + $0x8] sm:$0xff] %vm574, %v567
      %577 = vst.msk [vmem:[%s96 + $0x10] sm:$0xff] %vm574, %v568
      %578 = vst.msk [vmem:[%s96 + $0x18] sm:$0xff] %vm574, %v569
      %579 = vst.msk [vmem:[%s96 + $0x20] sm:$0xff] %vm574, %v570
      %580 = vst.msk [vmem:[%s96 + $0x28] sm:$0xff] %vm574, %v571
      %581 = vst.msk [vmem:[%s96 + $0x30] sm:$0xff] %vm574, %v572
      %582 = vst.msk [vmem:[%s96 + $0x38] sm:$0xff] %vm574, %v573
      %s583 = smul.u32 8, %s12
      %p584 = scmp.lt.s32.totalorder %s583, 15
      %s585 = scalar_select %p584, %s583, 15
      %s586 = smul.addr %s585, 8
      %s587 = scalar_lea.vmem %s1, %s586
      // Predicated region
      $region25: #{nt_xent_loss.1} parent=23 // pred_check
        %p588 = pneg %p51
      $region26: #{nt_xent_loss.1} parent=23 // pred_check_branch
        %590 = sbr.rel (%p588) target = $region28
      $region27: #{nt_xent_loss.1} parent=23 // pred_region
        %s591 = smul.u32 8, %s12
      $region28: #{nt_xent_loss.1} parent=23 // pred_fallthru
        _
    $region24: #{nt_xent_loss.1} parent=5 // pred_fallthru
      _
    %p592 = scmp.le.s32.totalorder 2, %s7
    // Predicated region
    $region29: #{nt_xent_loss.1} parent=5 // pred_check
      %p593 = pneg %p592
    $region30: #{nt_xent_loss.1} parent=5 // pred_check_branch
      %595 = sbr.rel (%p593) target = $region32
    $region31: #{nt_xent_loss.1} parent=5 // pred_region
      %s596 = ssub.s32 %s7, 2
      // Predicated region
      $region33: #{nt_xent_loss.1} parent=31 // pred_check
        %p597 = pneg %p57
      $region34: #{nt_xent_loss.1} parent=31 // pred_check_branch
        %599 = sbr.rel (%p597) target = $region36
      $region35: #{nt_xent_loss.1} parent=31 // pred_region
        %s600 = smul.u32 8, %s13
        %p601 = scmp.lt.s32.totalorder %s600, 15
        %s602 = scalar_select %p601, %s600, 15
        %s603 = smul.addr %s602, 8
        %s604 = scalar_lea.vmem %s1, %s603
      $region36: #{nt_xent_loss.1} parent=31 // pred_fallthru
        _
    $region32: #{nt_xent_loss.1} parent=5 // pred_fallthru
      _
  $region6: #{nt_xent_loss.1} parent=0 // loop_footer
    %s11 = sadd.s32 1, %s7
  $region7: #{nt_xent_loss.1} parent=0 // loop_footer_branch
    %6 = sbr.rel target = $region3
  $region8: #{nt_xent_loss.1} parent=0 // loop_exit
    _

</llo_original>
